<compile_context>
chip_gen: v7x
topology: tpu7x:2x2x1
jax: 0.10.0
libtpu: 0.0.40
codegen_flags: <defaults>
</compile_context>

<pallas_src>
import functools

import jax
import jax.numpy as jnp
from jax.experimental import pallas as pl
from jax.experimental.pallas import tpu as pltpu

LANE = 128
SUBLANE = 8
IN_FEATURES = 784


def _round_up(v, m):
    return ((v + m - 1) // m) * m


def _fused_mlp_kernel(*refs, n_layers):
    """Fused MLP: o = Wn(...relu(W1 x + b1)...) + bn, all inside one kernel.

    refs = (x_ref, w0, b0, w1, b1, ..., o_ref).  Hidden activations stay in
    vregs/VMEM; only the final (lane-dense, 128-padded) logits are stored.
    """
    x_ref = refs[0]
    o_ref = refs[-1]
    wb = refs[1:-1]

    h = x_ref[...]
    for li in range(n_layers):
        w = wb[2 * li][...]
        b = wb[2 * li + 1][...]
        h = jnp.dot(h, w, preferred_element_type=jnp.float32) + b
        if li != n_layers - 1:
            h = jnp.maximum(h, 0.0)  # ReLU on all but the last layer
    o_ref[...] = h.astype(o_ref.dtype)


def _classifier_forward_impl(x, params):
    """Equivalent of Classifier.forward: flatten to (B, 784), fused MLP."""
    x = x.reshape(-1, IN_FEATURES).astype(jnp.float32)
    B = x.shape[0]
    n_layers = len(params)

    # Lane-dense output: zero-pad the last layer's W/b to a multiple of 128.
    ws, bs = [], []
    for li, (w, b) in enumerate(params):
        if li == n_layers - 1:
            out_pad = _round_up(w.shape[1], LANE)
            w = jnp.pad(w, ((0, 0), (0, out_pad - w.shape[1])))
            b = jnp.pad(b, ((0, 0), (0, out_pad - b.shape[1])))
        ws.append(w)
        bs.append(b)
    out_true = params[-1][0].shape[1]
    out_pad = ws[-1].shape[1]

    # Pad batch (sublane) dim to a multiple of 8 and pick a batch tile.
    # Small batches: one grid step covering the whole padded batch.
    # Large batches: TILE_B=512 grid axis, pipelined + parallel across cores.
    if B <= 512:
        tile_b = _round_up(max(B, 1), SUBLANE)
        b_padded = tile_b
    else:
        tile_b = 512
        b_padded = _round_up(B, tile_b)
    if b_padded != B:
        x = jnp.pad(x, ((0, b_padded - B), (0, 0)))

    grid = (b_padded // tile_b,)

    in_specs = [pl.BlockSpec((tile_b, IN_FEATURES), lambda i: (i, 0))]
    inputs = [x]
    for w, b in zip(ws, bs):
        # Weights/biases: full-array blocks, same index every grid step
        # -> stay resident in VMEM across the batch tiles.
        in_specs.append(pl.BlockSpec(w.shape, lambda i: (0, 0)))
        in_specs.append(pl.BlockSpec(b.shape, lambda i: (0, 0)))
        inputs.append(w)
        inputs.append(b)

    out = pl.pallas_call(
        functools.partial(_fused_mlp_kernel, n_layers=n_layers),
        out_shape=jax.ShapeDtypeStruct((b_padded, out_pad), jnp.float32),
        grid=grid,
        in_specs=in_specs,
        out_specs=pl.BlockSpec((tile_b, out_pad), lambda i: (i, 0)),
        compiler_params=pltpu.CompilerParams(
            # Batch tiles are independent -> shard across TCs on v7x.
            dimension_semantics=("parallel",),
        ),
    )(*inputs)

    # Drop the batch padding and the lane padding (back to true logits).
    return out[:B, :out_true]


# jit so kernel construction / tracing happens once per input shape.
classifier_forward = jax.jit(_classifier_forward_impl)


def init_classifier_params(key, units):
    """Deterministic init mimicking torch.nn.Linear defaults
    (uniform(-1/sqrt(fan_in), 1/sqrt(fan_in))).  Weights stored as (in, out)."""
    dims = [IN_FEATURES] + list(units) + [10]
    params = []
    for i in range(len(dims) - 1):
        fan_in, fan_out = dims[i], dims[i + 1]
        key, kw, kb = jax.random.split(key, 3)
        bound = 1.0 / jnp.sqrt(jnp.float32(fan_in))
        w = jax.random.uniform(
            kw, (fan_in, fan_out), jnp.float32, minval=-bound, maxval=bound
        )
        b = jax.random.uniform(
            kb, (1, fan_out), jnp.float32, minval=-bound, maxval=bound
        )
        params.append((w, b))
    return params


def reference_forward(x, params):
    """Pure-JAX reference for a correctness check."""
    x = x.reshape(-1, IN_FEATURES)
    n_layers = len(params)
    for li, (w, b) in enumerate(params):
        x = x @ w + b
        if li != n_layers - 1:
            x = jnp.maximum(x, 0.0)
    return x


if __name__ == "__main__":
    key = jax.random.PRNGKey(0)
    key, k_x, k_p = jax.random.split(key, 3)

    # Small MNIST-like batch: (B, C, H, W) = (2, 1, 28, 28) -> flattens to (2, 784)
    x = jax.random.normal(k_x, (2, 1, 28, 28), dtype=jnp.float32)

    units = [32]  # one hidden layer of 32 units
    params = init_classifier_params(k_p, units)

    out = classifier_forward(x, params)
    out = jax.block_until_ready(out)

    ref = reference_forward(x, params)
    assert out.shape == (2, 10), out.shape
    assert jnp.allclose(out, ref, atol=1e-4, rtol=1e-4), "mismatch vs reference"

    print("KERNEL_OK")
</pallas_src>

<mosaic_0001>
module attributes {stable_mosaic.version = 11 : i64} {
  func.func @_fused_mlp_kernel(%arg0: i32, %arg1: memref<8x784xf32, #tpu.memory_space<vmem>>, %arg2: memref<784x32xf32, #tpu.memory_space<vmem>>, %arg3: memref<1x32xf32, #tpu.memory_space<vmem>>, %arg4: memref<32x128xf32, #tpu.memory_space<vmem>>, %arg5: memref<1x128xf32, #tpu.memory_space<vmem>>, %arg6: memref<8x128xf32, #tpu.memory_space<vmem>>) attributes {dimension_semantics = [#tpu.dimension_semantics<parallel>], iteration_bounds = array<i64: 1>, scalar_prefetch = 0 : i64, scratch_operands = 0 : i64, tpu.core_type = #tpu.core_type<tc>, window_params = [{transform_indices = @transform_0, window_bounds = array<i64: 8, 784>}, {pipeline_mode = #tpu.pipeline_mode<synchronous>, transform_indices = @transform_1, window_bounds = array<i64: 784, 32>}, {pipeline_mode = #tpu.pipeline_mode<synchronous>, transform_indices = @transform_2, window_bounds = array<i64: 1, 32>}, {pipeline_mode = #tpu.pipeline_mode<synchronous>, transform_indices = @transform_3, window_bounds = array<i64: 32, 128>}, {pipeline_mode = #tpu.pipeline_mode<synchronous>, transform_indices = @transform_4, window_bounds = array<i64: 1, 128>}, {transform_indices = @transform_5, window_bounds = array<i64: 8, 128>}]} {
    %c0 = arith.constant 0 : index
    %c0_0 = arith.constant 0 : index
    %0 = vector.load %arg1[%c0, %c0_0] : memref<8x784xf32, #tpu.memory_space<vmem>>, vector<8x784xf32>
    %c0_1 = arith.constant 0 : index
    %c0_2 = arith.constant 0 : index
    %1 = vector.load %arg2[%c0_1, %c0_2] : memref<784x32xf32, #tpu.memory_space<vmem>>, vector<784x32xf32>
    %c0_3 = arith.constant 0 : index
    %c0_4 = arith.constant 0 : index
    %2 = vector.load %arg3[%c0_3, %c0_4] : memref<1x32xf32, #tpu.memory_space<vmem>>, vector<1x32xf32>
    %cst = arith.constant dense<0.000000e+00> : vector<8x32xf32>
    %3 = tpu.matmul %0, %1, %cst {dimension_numbers = #tpu.dot_dimension_numbers<[1], [0], [0], [1], [0, 0, 1, 1], [], []>} : vector<8x784xf32>, vector<784x32xf32>, vector<8x32xf32> -> vector<8x32xf32>
    %4 = vector.broadcast %2 : vector<1x32xf32> to vector<8x32xf32>
    %5 = arith.addf %3, %4 : vector<8x32xf32>
    %cst_5 = arith.constant 0.000000e+00 : f32
    %6 = vector.broadcast %cst_5 : f32 to vector<8x32xf32>
    %7 = arith.maximumf %5, %6 : vector<8x32xf32>
    %c0_6 = arith.constant 0 : index
    %c0_7 = arith.constant 0 : index
    %8 = vector.load %arg4[%c0_6, %c0_7] : memref<32x128xf32, #tpu.memory_space<vmem>>, vector<32x128xf32>
    %c0_8 = arith.constant 0 : index
    %c0_9 = arith.constant 0 : index
    %9 = vector.load %arg5[%c0_8, %c0_9] : memref<1x128xf32, #tpu.memory_space<vmem>>, vector<1x128xf32>
    %cst_10 = arith.constant dense<0.000000e+00> : vector<8x128xf32>
    %10 = tpu.matmul %7, %8, %cst_10 {dimension_numbers = #tpu.dot_dimension_numbers<[1], [0], [0], [1], [0, 0, 1, 1], [], []>} : vector<8x32xf32>, vector<32x128xf32>, vector<8x128xf32> -> vector<8x128xf32>
    %11 = vector.broadcast %9 : vector<1x128xf32> to vector<8x128xf32>
    %12 = arith.addf %10, %11 : vector<8x128xf32>
    %c0_11 = arith.constant 0 : index
    %c0_12 = arith.constant 0 : index
    %13 = vector.load %arg6[%c0_11, %c0_12] : memref<8x128xf32, #tpu.memory_space<vmem>>, vector<8x128xf32>
    tpu.vector_store %arg6[%c0_11, %c0_12], %12 {strides = array<i32>} : memref<8x128xf32, #tpu.memory_space<vmem>>, vector<8x128xf32>,
    return
  }
  func.func @transform_0(%arg0: i32) -> (i32, i32) {
    %c0_i32 = arith.constant 0 : i32
    %c0_i32_0 = arith.constant 0 : i32
    return %arg0, %c0_i32 : i32, i32
  }
  func.func @transform_1(%arg0: i32) -> (i32, i32) {
    %c0_i32 = arith.constant 0 : i32
    %c0_i32_0 = arith.constant 0 : i32
    %c0_i32_1 = arith.constant 0 : i32
    return %c0_i32, %c0_i32_0 : i32, i32
  }
  func.func @transform_2(%arg0: i32) -> (i32, i32) {
    %c0_i32 = arith.constant 0 : i32
    %c0_i32_0 = arith.constant 0 : i32
    %c0_i32_1 = arith.constant 0 : i32
    return %c0_i32, %c0_i32_0 : i32, i32
  }
  func.func @transform_3(%arg0: i32) -> (i32, i32) {
    %c0_i32 = arith.constant 0 : i32
    %c0_i32_0 = arith.constant 0 : i32
    %c0_i32_1 = arith.constant 0 : i32
    return %c0_i32, %c0_i32_0 : i32, i32
  }
  func.func @transform_4(%arg0: i32) -> (i32, i32) {
    %c0_i32 = arith.constant 0 : i32
    %c0_i32_0 = arith.constant 0 : i32
    %c0_i32_1 = arith.constant 0 : i32
    return %c0_i32, %c0_i32_0 : i32, i32
  }
  func.func @transform_5(%arg0: i32) -> (i32, i32) {
    %c0_i32 = arith.constant 0 : i32
    %c0_i32_0 = arith.constant 0 : i32
    return %arg0, %c0_i32 : i32, i32
  }
}

</mosaic_0001>

<llo_original>
// kernel: _classifier_forward_impl.1
$region0: #{_classifier_forward_impl.1}
  #allocation0 [shape = 'u32[]', space=smem, size = 0x4, offset = 0x4, fixed_abs, tag = 'smem constant byte address 0x4 - core index']
  #allocation1 [shape = 'u32[144,128]{1,0:T(1,128)}', space=vmem, size = 0x12000, scoped, tag = 'internal scratch']
  %s0 = inlined_call_operand.vmem [shape: f32[8,784], index: 0, kind: input, shape index: {}]
  %s1 = inlined_call_operand.vmem [shape: f32[784,32], index: 1, kind: input, shape index: {}]
  %s2 = inlined_call_operand.vmem [shape: f32[1,32], index: 2, kind: input, shape index: {}]
  %s3 = inlined_call_operand.vmem [shape: f32[32,128], index: 3, kind: input, shape index: {}]
  %s4 = inlined_call_operand.vmem [shape: f32[1,128], index: 4, kind: input, shape index: {}]
  %s5 = inlined_call_operand.vmem [shape: f32[8,128], index: 5, kind: output, shape index: {}]
  %s6 = sld [smem:[#allocation0]]
  $region30: #{_classifier_forward_impl.1} parent=0
    _
  %s8 = ssub.s32 1, %s6
  %s9 = scalar_select 0, %s8, %s6
  // Predicated region
  $region2: #{_classifier_forward_impl.1} parent=0 // pred_check
    _
  $region3: #{_classifier_forward_impl.1} parent=0 // pred_check_branch
    %11 = sbr.rel (0) target = $region5
  $region4: #{_classifier_forward_impl.1} parent=0 // pred_region
    _
  $region5: #{_classifier_forward_impl.1} parent=0 // pred_fallthru
    _
  // Predicated region
  $region6: #{_classifier_forward_impl.1} parent=0 // pred_check
    _
  $region7: #{_classifier_forward_impl.1} parent=0 // pred_check_branch
    %13 = sbr.rel (0) target = $region9
  $region8: #{_classifier_forward_impl.1} parent=0 // pred_region
    _
  $region9: #{_classifier_forward_impl.1} parent=0 // pred_fallthru
    _
  // Predicated region
  $region10: #{_classifier_forward_impl.1} parent=0 // pred_check
    _
  $region11: #{_classifier_forward_impl.1} parent=0 // pred_check_branch
    %15 = sbr.rel (0) target = $region13
  $region12: #{_classifier_forward_impl.1} parent=0 // pred_region
    _
  $region13: #{_classifier_forward_impl.1} parent=0 // pred_fallthru
    _
  // Predicated region
  $region14: #{_classifier_forward_impl.1} parent=0 // pred_check
    _
  $region15: #{_classifier_forward_impl.1} parent=0 // pred_check_branch
    %17 = sbr.rel (0) target = $region17
  $region16: #{_classifier_forward_impl.1} parent=0 // pred_region
    _
  $region17: #{_classifier_forward_impl.1} parent=0 // pred_fallthru
    _
  // Predicated region
  $region18: #{_classifier_forward_impl.1} parent=0 // pred_check
    _
  $region19: #{_classifier_forward_impl.1} parent=0 // pred_check_branch
    %19 = sbr.rel (0) target = $region21
  $region20: #{_classifier_forward_impl.1} parent=0 // pred_region
    _
  $region21: #{_classifier_forward_impl.1} parent=0 // pred_fallthru
    _
  %v20 = vld [vmem:[%s0] sm:$0xff]
  %v21 = vld [vmem:[%s0 + $0x8] sm:$0xff]
  %v22 = vld [vmem:[%s0 + $0x10] sm:$0xff]
  %v23 = vld [vmem:[%s0 + $0x18] sm:$0xff]
  %v24 = vld [vmem:[%s0 + $0x20] sm:$0xff]
  %v25 = vld [vmem:[%s0 + $0x28] sm:$0xff]
  %v26 = vld [vmem:[%s0 + $0x30] sm:$0xff]
  %v27 = vld [vmem:[%s1] sm:$0xff]
  %v28 = vld [vmem:[%s1 + $0x8] sm:$0xff]
  %v29 = vld [vmem:[%s1 + $0x10] sm:$0xff]
  %v30 = vld [vmem:[%s1 + $0x18] sm:$0xff]
  %v31 = vld [vmem:[%s1 + $0x20] sm:$0xff]
  %v32 = vld [vmem:[%s1 + $0x28] sm:$0xff]
  %v33 = vld [vmem:[%s1 + $0x30] sm:$0xff]
  %v34 = vld [vmem:[%s1 + $0x38] sm:$0xff]
  %v35 = vld [vmem:[%s1 + $0x40] sm:$0xff]
  %v36 = vld [vmem:[%s1 + $0x48] sm:$0xff]
  %v37 = vld [vmem:[%s1 + $0x50] sm:$0xff]
  %v38 = vld [vmem:[%s1 + $0x58] sm:$0xff]
  %v39 = vld [vmem:[%s1 + $0x60] sm:$0xff]
  %v40 = vld [vmem:[%s1 + $0x68] sm:$0xff]
  %v41 = vld [vmem:[%s1 + $0x70] sm:$0xff]
  %v42 = vld [vmem:[%s1 + $0x78] sm:$0xff]
  %v43 = vld [vmem:[%s1 + $0x80] sm:$0xff]
  %v44 = vld [vmem:[%s1 + $0x88] sm:$0xff]
  %v45 = vld [vmem:[%s1 + $0x90] sm:$0xff]
  %v46 = vld [vmem:[%s1 + $0x98] sm:$0xff]
  %v47 = vld [vmem:[%s1 + $0xa0] sm:$0xff]
  %v48 = vld [vmem:[%s1 + $0xa8] sm:$0xff]
  %v49 = vld [vmem:[%s1 + $0xb0] sm:$0xff]
  %v50 = vld [vmem:[%s1 + $0xb8] sm:$0xff]
  %v51 = vld [vmem:[%s1 + $0xc0] sm:$0xff]
  %v52 = vld [vmem:[%s1 + $0xc8] sm:$0xff]
  %v53 = vld [vmem:[%s1 + $0xd0] sm:$0xff]
  %v54 = vld [vmem:[%s1 + $0xd8] sm:$0xff]
  %v55 = vld [vmem:[%s1 + $0xe0] sm:$0xff]
  %v56 = vld [vmem:[%s1 + $0xe8] sm:$0xff]
  %v57 = vld [vmem:[%s1 + $0xf0] sm:$0xff]
  %v58 = vld [vmem:[%s1 + $0xf8] sm:$0xff]
  %v59 = vld [vmem:[%s1 + $0x100] sm:$0xff]
  %v60 = vld [vmem:[%s1 + $0x108] sm:$0xff]
  %v61 = vld [vmem:[%s1 + $0x110] sm:$0xff]
  %v62 = vld [vmem:[%s1 + $0x118] sm:$0xff]
  %v63 = vld [vmem:[%s1 + $0x120] sm:$0xff]
  %v64 = vld [vmem:[%s1 + $0x128] sm:$0xff]
  %v65 = vld [vmem:[%s1 + $0x130] sm:$0xff]
  %v66 = vld [vmem:[%s1 + $0x138] sm:$0xff]
  %v67 = vld [vmem:[%s1 + $0x140] sm:$0xff]
  %v68 = vld [vmem:[%s1 + $0x148] sm:$0xff]
  %v69 = vld [vmem:[%s1 + $0x150] sm:$0xff]
  %v70 = vld [vmem:[%s1 + $0x158] sm:$0xff]
  %v71 = vld [vmem:[%s1 + $0x160] sm:$0xff]
  %v72 = vld [vmem:[%s1 + $0x168] sm:$0xff]
  %v73 = vld [vmem:[%s1 + $0x170] sm:$0xff]
  %v74 = vld [vmem:[%s1 + $0x178] sm:$0xff]
  %v75 = vld [vmem:[%s1 + $0x180] sm:$0xff]
  %v76 = vld [vmem:[%s1 + $0x188] sm:$0xff]
  %v77 = vld [vmem:[%s1 + $0x190] sm:$0xff]
  %v78 = vld [vmem:[%s1 + $0x198] sm:$0xff]
  %v79 = vld [vmem:[%s1 + $0x1a0] sm:$0xff]
  %v80 = vld [vmem:[%s1 + $0x1a8] sm:$0xff]
  %v81 = vld [vmem:[%s1 + $0x1b0] sm:$0xff]
  %v82 = vld [vmem:[%s1 + $0x1b8] sm:$0xff]
  %v83 = vld [vmem:[%s1 + $0x1c0] sm:$0xff]
  %v84 = vld [vmem:[%s1 + $0x1c8] sm:$0xff]
  %v85 = vld [vmem:[%s1 + $0x1d0] sm:$0xff]
  %v86 = vld [vmem:[%s1 + $0x1d8] sm:$0xff]
  %v87 = vld [vmem:[%s1 + $0x1e0] sm:$0xff]
  %v88 = vld [vmem:[%s1 + $0x1e8] sm:$0xff]
  %v89 = vld [vmem:[%s1 + $0x1f0] sm:$0xff]
  %v90 = vld [vmem:[%s1 + $0x1f8] sm:$0xff]
  %v91 = vld [vmem:[%s1 + $0x200] sm:$0xff]
  %v92 = vld [vmem:[%s1 + $0x208] sm:$0xff]
  %v93 = vld [vmem:[%s1 + $0x210] sm:$0xff]
  %v94 = vld [vmem:[%s1 + $0x218] sm:$0xff]
  %v95 = vld [vmem:[%s1 + $0x220] sm:$0xff]
  %v96 = vld [vmem:[%s1 + $0x228] sm:$0xff]
  %v97 = vld [vmem:[%s1 + $0x230] sm:$0xff]
  %v98 = vld [vmem:[%s1 + $0x238] sm:$0xff]
  %v99 = vld [vmem:[%s1 + $0x240] sm:$0xff]
  %v100 = vld [vmem:[%s1 + $0x248] sm:$0xff]
  %v101 = vld [vmem:[%s1 + $0x250] sm:$0xff]
  %v102 = vld [vmem:[%s1 + $0x258] sm:$0xff]
  %v103 = vld [vmem:[%s1 + $0x260] sm:$0xff]
  %v104 = vld [vmem:[%s1 + $0x268] sm:$0xff]
  %v105 = vld [vmem:[%s1 + $0x270] sm:$0xff]
  %v106 = vld [vmem:[%s1 + $0x278] sm:$0xff]
  %v107 = vld [vmem:[%s1 + $0x280] sm:$0xff]
  %v108 = vld [vmem:[%s1 + $0x288] sm:$0xff]
  %v109 = vld [vmem:[%s1 + $0x290] sm:$0xff]
  %v110 = vld [vmem:[%s1 + $0x298] sm:$0xff]
  %v111 = vld [vmem:[%s1 + $0x2a0] sm:$0xff]
  %v112 = vld [vmem:[%s1 + $0x2a8] sm:$0xff]
  %v113 = vld [vmem:[%s1 + $0x2b0] sm:$0xff]
  %v114 = vld [vmem:[%s1 + $0x2b8] sm:$0xff]
  %v115 = vld [vmem:[%s1 + $0x2c0] sm:$0xff]
  %v116 = vld [vmem:[%s1 + $0x2c8] sm:$0xff]
  %v117 = vld [vmem:[%s1 + $0x2d0] sm:$0xff]
  %v118 = vld [vmem:[%s1 + $0x2d8] sm:$0xff]
  %v119 = vld [vmem:[%s1 + $0x2e0] sm:$0xff]
  %v120 = vld [vmem:[%s1 + $0x2e8] sm:$0xff]
  %v121 = vld [vmem:[%s1 + $0x2f0] sm:$0xff]
  %v122 = vld [vmem:[%s1 + $0x2f8] sm:$0xff]
  %v123 = vld [vmem:[%s1 + $0x300] sm:$0xff]
  %v124 = vld [vmem:[%s1 + $0x308] sm:$0xff]
  %v125 = vld [vmem:[%s2] sm:$0x1]
  %v127 = vlaneseq
  %v128 = vshrl.u32 %v127, 7
  %v129 = vsub.s32 0, %v128
  %v130 = vrot.slane %v125, %v129
  %vm132 = vcmask 130048
  %v134 = vsel %vm132, %v26, 0
  %136 = vmatprep.subr.mxu0 0.0
  %137 = vmatpush1.msra.mxu0 %v27
  %138 = vmatprep.subr.mxu0 0.0
  %139 = vmatpush1.msra.mxu0 %v28
  %140 = vmatprep.subr.mxu0 0.0
  %141 = vmatpush1.msra.mxu0 %v29
  %142 = vmatprep.subr.mxu0 0.0
  %143 = vmatpush1.msra.mxu0 %v30
  %144 = vmatprep.subr.mxu0 0.0
  %145 = vmatpush1.msra.mxu0 %v31
  %146 = vmatprep.subr.mxu0 0.0
  %147 = vmatpush1.msra.mxu0 %v32
  %148 = vmatprep.subr.mxu0 0.0
  %149 = vmatpush1.msra.mxu0 %v33
  %150 = vmatprep.subr.mxu0 0.0
  %151 = vmatpush1.msra.mxu0 %v34
  %152 = vmatprep.subr.mxu0 0.0
  %153 = vmatpush1.msra.mxu0 %v35
  %154 = vmatprep.subr.mxu0 0.0
  %155 = vmatpush1.msra.mxu0 %v36
  %156 = vmatprep.subr.mxu0 0.0
  %157 = vmatpush1.msra.mxu0 %v37
  %158 = vmatprep.subr.mxu0 0.0
  %159 = vmatpush1.msra.mxu0 %v38
  %160 = vmatprep.subr.mxu0 0.0
  %161 = vmatpush1.msra.mxu0 %v39
  %162 = vmatprep.subr.mxu0 0.0
  %163 = vmatpush1.msra.mxu0 %v40
  %164 = vmatprep.subr.mxu0 0.0
  %165 = vmatpush1.msra.mxu0 %v41
  %166 = vmatprep.subr.mxu0 0.0
  %167 = vmatpush1.msra.mxu0 %v42
  %168 = vmatprep.subr.mxu0 0.0
  %169 = vmatpush1.msra.mxu0 %v43
  %170 = vmatprep.subr.mxu0 0.0
  %171 = vmatpush1.msra.mxu0 %v44
  %172 = vmatprep.subr.mxu0 0.0
  %173 = vmatpush1.msra.mxu0 %v45
  %174 = vmatprep.subr.mxu0 0.0
  %175 = vmatpush1.msra.mxu0 %v46
  %176 = vmatprep.subr.mxu0 0.0
  %177 = vmatpush1.msra.mxu0 %v47
  %178 = vmatprep.subr.mxu0 0.0
  %179 = vmatpush1.msra.mxu0 %v48
  %180 = vmatprep.subr.mxu0 0.0
  %181 = vmatpush1.msra.mxu0 %v49
  %182 = vmatprep.subr.mxu0 0.0
  %183 = vmatpush1.msra.mxu0 %v50
  %184 = vmatprep.subr.mxu0 0.0
  %185 = vmatpush1.msra.mxu0 %v51
  %186 = vmatprep.subr.mxu0 0.0
  %187 = vmatpush1.msra.mxu0 %v52
  %188 = vmatprep.subr.mxu0 0.0
  %189 = vmatpush1.msra.mxu0 %v53
  %190 = vmatprep.subr.mxu0 0.0
  %191 = vmatpush1.msra.mxu0 %v54
  %192 = vmatprep.subr.mxu0 0.0
  %193 = vmatpush1.msra.mxu0 %v55
  %194 = vmatprep.subr.mxu0 0.0
  %195 = vmatpush1.msra.mxu0 %v56
  %196 = vmatprep.subr.mxu0 0.0
  %197 = vmatpush1.msra.mxu0 %v57
  %198 = vmatprep.subr.mxu0 0.0
  %199 = vmatpush1.msra.mxu0 %v58
  %200 = vmatprep.mubr.f32.mxu0 %v21
  %201 = vmatmul.mubr.f32.gmra.mrb[0].mxu0 %v20
  %v202 = vpop.f32.mrb[0].mxu0
  %v203 = vadd.f32 %v130, %v202
  %v204 = vpop.f32.mrb[0].mxu0
  %205 = vdwg.mxu0
  %206 = vmatprep.subr.mxu0 0.0
  %207 = vmatpush1.msra.mxu0 %v59
  %208 = vmatprep.subr.mxu0 0.0
  %209 = vmatpush1.msra.mxu0 %v60
  %210 = vmatprep.subr.mxu0 0.0
  %211 = vmatpush1.msra.mxu0 %v61
  %212 = vmatprep.subr.mxu0 0.0
  %213 = vmatpush1.msra.mxu0 %v62
  %214 = vmatprep.subr.mxu0 0.0
  %215 = vmatpush1.msra.mxu0 %v63
  %216 = vmatprep.subr.mxu0 0.0
  %217 = vmatpush1.msra.mxu0 %v64
  %218 = vmatprep.subr.mxu0 0.0
  %219 = vmatpush1.msra.mxu0 %v65
  %220 = vmatprep.subr.mxu0 0.0
  %221 = vmatpush1.msra.mxu0 %v66
  %222 = vmatprep.subr.mxu0 0.0
  %223 = vmatpush1.msra.mxu0 %v67
  %224 = vmatprep.subr.mxu0 0.0
  %225 = vmatpush1.msra.mxu0 %v68
  %226 = vmatprep.subr.mxu0 0.0
  %227 = vmatpush1.msra.mxu0 %v69
  %228 = vmatprep.subr.mxu0 0.0
  %229 = vmatpush1.msra.mxu0 %v70
  %230 = vmatprep.subr.mxu0 0.0
  %231 = vmatpush1.msra.mxu0 %v71
  %232 = vmatprep.subr.mxu0 0.0
  %233 = vmatpush1.msra.mxu0 %v72
  %234 = vmatprep.subr.mxu0 0.0
  %235 = vmatpush1.msra.mxu0 %v73
  %236 = vmatprep.subr.mxu0 0.0
  %237 = vmatpush1.msra.mxu0 %v74
  %238 = vmatprep.subr.mxu0 0.0
  %239 = vmatpush1.msra.mxu0 %v75
  %240 = vmatprep.subr.mxu0 0.0
  %241 = vmatpush1.msra.mxu0 %v76
  %242 = vmatprep.subr.mxu0 0.0
  %243 = vmatpush1.msra.mxu0 %v77
  %244 = vmatprep.subr.mxu0 0.0
  %245 = vmatpush1.msra.mxu0 %v78
  %246 = vmatprep.subr.mxu0 0.0
  %247 = vmatpush1.msra.mxu0 %v79
  %248 = vmatprep.subr.mxu0 0.0
  %249 = vmatpush1.msra.mxu0 %v80
  %250 = vmatprep.subr.mxu0 0.0
  %251 = vmatpush1.msra.mxu0 %v81
  %252 = vmatprep.subr.mxu0 0.0
  %253 = vmatpush1.msra.mxu0 %v82
  %254 = vmatprep.subr.mxu0 0.0
  %255 = vmatpush1.msra.mxu0 %v83
  %256 = vmatprep.subr.mxu0 0.0
  %257 = vmatpush1.msra.mxu0 %v84
  %258 = vmatprep.subr.mxu0 0.0
  %259 = vmatpush1.msra.mxu0 %v85
  %260 = vmatprep.subr.mxu0 0.0
  %261 = vmatpush1.msra.mxu0 %v86
  %262 = vmatprep.subr.mxu0 0.0
  %263 = vmatpush1.msra.mxu0 %v87
  %264 = vmatprep.subr.mxu0 0.0
  %265 = vmatpush1.msra.mxu0 %v88
  %266 = vmatprep.subr.mxu0 0.0
  %267 = vmatpush1.msra.mxu0 %v89
  %268 = vmatprep.subr.mxu0 0.0
  %269 = vmatpush1.msra.mxu0 %v90
  %270 = vmatprep.mubr.f32.mxu0 %v23
  %271 = vmatmul.mubr.f32.gmra.mrb[0].mxu0 %v22
  %v272 = vpop.f32.mrb[0].mxu0
  %v273 = vadd.f32 %v203, %v272
  %v274 = vpop.f32.mrb[0].mxu0
  %275 = vdwg.mxu0
  %276 = vmatprep.subr.mxu0 0.0
  %277 = vmatpush1.msra.mxu0 %v91
  %278 = vmatprep.subr.mxu0 0.0
  %279 = vmatpush1.msra.mxu0 %v92
  %280 = vmatprep.subr.mxu0 0.0
  %281 = vmatpush1.msra.mxu0 %v93
  %282 = vmatprep.subr.mxu0 0.0
  %283 = vmatpush1.msra.mxu0 %v94
  %284 = vmatprep.subr.mxu0 0.0
  %285 = vmatpush1.msra.mxu0 %v95
  %286 = vmatprep.subr.mxu0 0.0
  %287 = vmatpush1.msra.mxu0 %v96
  %288 = vmatprep.subr.mxu0 0.0
  %289 = vmatpush1.msra.mxu0 %v97
  %290 = vmatprep.subr.mxu0 0.0
  %291 = vmatpush1.msra.mxu0 %v98
  %292 = vmatprep.subr.mxu0 0.0
  %293 = vmatpush1.msra.mxu0 %v99
  %294 = vmatprep.subr.mxu0 0.0
  %295 = vmatpush1.msra.mxu0 %v100
  %296 = vmatprep.subr.mxu0 0.0
  %297 = vmatpush1.msra.mxu0 %v101
  %298 = vmatprep.subr.mxu0 0.0
  %299 = vmatpush1.msra.mxu0 %v102
  %300 = vmatprep.subr.mxu0 0.0
  %301 = vmatpush1.msra.mxu0 %v103
  %302 = vmatprep.subr.mxu0 0.0
  %303 = vmatpush1.msra.mxu0 %v104
  %304 = vmatprep.subr.mxu0 0.0
  %305 = vmatpush1.msra.mxu0 %v105
  %306 = vmatprep.subr.mxu0 0.0
  %307 = vmatpush1.msra.mxu0 %v106
  %308 = vmatprep.subr.mxu0 0.0
  %309 = vmatpush1.msra.mxu0 %v107
  %310 = vmatprep.subr.mxu0 0.0
  %311 = vmatpush1.msra.mxu0 %v108
  %312 = vmatprep.subr.mxu0 0.0
  %313 = vmatpush1.msra.mxu0 %v109
  %314 = vmatprep.subr.mxu0 0.0
  %315 = vmatpush1.msra.mxu0 %v110
  %316 = vmatprep.subr.mxu0 0.0
  %317 = vmatpush1.msra.mxu0 %v111
  %318 = vmatprep.subr.mxu0 0.0
  %319 = vmatpush1.msra.mxu0 %v112
  %320 = vmatprep.subr.mxu0 0.0
  %321 = vmatpush1.msra.mxu0 %v113
  %322 = vmatprep.subr.mxu0 0.0
  %323 = vmatpush1.msra.mxu0 %v114
  %324 = vmatprep.subr.mxu0 0.0
  %325 = vmatpush1.msra.mxu0 %v115
  %326 = vmatprep.subr.mxu0 0.0
  %327 = vmatpush1.msra.mxu0 %v116
  %328 = vmatprep.subr.mxu0 0.0
  %329 = vmatpush1.msra.mxu0 %v117
  %330 = vmatprep.subr.mxu0 0.0
  %331 = vmatpush1.msra.mxu0 %v118
  %332 = vmatprep.subr.mxu0 0.0
  %333 = vmatpush1.msra.mxu0 %v119
  %334 = vmatprep.subr.mxu0 0.0
  %335 = vmatpush1.msra.mxu0 %v120
  %336 = vmatprep.subr.mxu0 0.0
  %337 = vmatpush1.msra.mxu0 %v121
  %338 = vmatprep.subr.mxu0 0.0
  %339 = vmatpush1.msra.mxu0 %v122
  %340 = vmatprep.mubr.f32.mxu0 %v25
  %341 = vmatmul.mubr.f32.gmra.mrb[0].mxu0 %v24
  %v342 = vpop.f32.mrb[0].mxu0
  %v343 = vadd.f32 %v273, %v342
  %v344 = vpop.f32.mrb[0].mxu0
  %345 = vdwg.mxu0
  %346 = vmatprep.subr.mxu0 0.0
  %347 = vmatpush1.msra.mxu0 %v123
  %348 = vmatprep.subr.mxu0 0.0
  %349 = vmatpush1.msra.mxu0 %v124
  %350 = vmatprep.subr.mxu0 0.0
  %351 = vmatpush1.msra.mxu0 0.0
  %352 = vmatprep.subr.mxu0 0.0
  %353 = vmatpush1.msra.mxu0 0.0
  %354 = vmatprep.subr.mxu0 0.0
  %355 = vmatpush1.msra.mxu0 0.0
  %356 = vmatprep.subr.mxu0 0.0
  %357 = vmatpush1.msra.mxu0 0.0
  %358 = vmatprep.subr.mxu0 0.0
  %359 = vmatpush1.msra.mxu0 0.0
  %360 = vmatprep.subr.mxu0 0.0
  %361 = vmatpush1.msra.mxu0 0.0
  %362 = vmatprep.subr.mxu0 0.0
  %363 = vmatpush1.msra.mxu0 0.0
  %364 = vmatprep.subr.mxu0 0.0
  %365 = vmatpush1.msra.mxu0 0.0
  %366 = vmatprep.subr.mxu0 0.0
  %367 = vmatpush1.msra.mxu0 0.0
  %368 = vmatprep.subr.mxu0 0.0
  %369 = vmatpush1.msra.mxu0 0.0
  %370 = vmatprep.subr.mxu0 0.0
  %371 = vmatpush1.msra.mxu0 0.0
  %372 = vmatprep.subr.mxu0 0.0
  %373 = vmatpush1.msra.mxu0 0.0
  %374 = vmatprep.subr.mxu0 0.0
  %375 = vmatpush1.msra.mxu0 0.0
  %376 = vmatprep.subr.mxu0 0.0
  %377 = vmatpush1.msra.mxu0 0.0
  %378 = vmatprep.subr.mxu0 0.0
  %379 = vmatpush1.msra.mxu0 0.0
  %380 = vmatprep.subr.mxu0 0.0
  %381 = vmatpush1.msra.mxu0 0.0
  %382 = vmatprep.subr.mxu0 0.0
  %383 = vmatpush1.msra.mxu0 0.0
  %384 = vmatprep.subr.mxu0 0.0
  %385 = vmatpush1.msra.mxu0 0.0
  %386 = vmatprep.subr.mxu0 0.0
  %387 = vmatpush1.msra.mxu0 0.0
  %388 = vmatprep.subr.mxu0 0.0
  %389 = vmatpush1.msra.mxu0 0.0
  %390 = vmatprep.subr.mxu0 0.0
  %391 = vmatpush1.msra.mxu0 0.0
  %392 = vmatprep.subr.mxu0 0.0
  %393 = vmatpush1.msra.mxu0 0.0
  %394 = vmatprep.subr.mxu0 0.0
  %395 = vmatpush1.msra.mxu0 0.0
  %396 = vmatprep.subr.mxu0 0.0
  %397 = vmatpush1.msra.mxu0 0.0
  %398 = vmatprep.subr.mxu0 0.0
  %399 = vmatpush1.msra.mxu0 0.0
  %400 = vmatprep.subr.mxu0 0.0
  %401 = vmatpush1.msra.mxu0 0.0
  %402 = vmatprep.subr.mxu0 0.0
  %403 = vmatpush1.msra.mxu0 0.0
  %404 = vmatprep.subr.mxu0 0.0
  %405 = vmatpush1.msra.mxu0 0.0
  %406 = vmatprep.subr.mxu0 0.0
  %407 = vmatpush1.msra.mxu0 0.0
  %408 = vmatprep.subr.mxu0 0.0
  %409 = vmatpush1.msra.mxu0 0.0
  %410 = vmatprep.mubr.f32.mxu0 0.0
  %411 = vmatmul.mubr.f32.gmra.mrb[0].mxu0 %v134
  %v412 = vpop.f32.mrb[0].mxu0
  %v413 = vadd.f32 %v343, %v412
  %v414 = vpop.f32.mrb[0].mxu0
  %415 = vdwg.mxu0
  %v416 = vmax.f32 %v413, 0.0
  %v417 = vld [vmem:[%s3] sm:$0xff]
  %v418 = vld [vmem:[%s3 + $0x8] sm:$0xff]
  %v419 = vld [vmem:[%s3 + $0x10] sm:$0xff]
  %v420 = vld [vmem:[%s3 + $0x18] sm:$0xff]
  %v421 = vld [vmem:[%s4] sm:$0x1]
  %v423 = vlaneseq
  %v424 = vshrl.u32 %v423, 7
  %v425 = vsub.s32 0, %v424
  %v426 = vrot.slane %v421, %v425
  %vm428 = vcmask 261120
  %v430 = vsel %vm428, %v416, 0
  %432 = vmatprep.subr.mxu0 0.0
  %433 = vmatpush1.msra.mxu0 %v417
  %434 = vmatprep.subr.mxu0 0.0
  %435 = vmatpush1.msra.mxu0 %v418
  %436 = vmatprep.subr.mxu0 0.0
  %437 = vmatpush1.msra.mxu0 %v419
  %438 = vmatprep.subr.mxu0 0.0
  %439 = vmatpush1.msra.mxu0 %v420
  %440 = vmatprep.subr.mxu0 0.0
  %441 = vmatpush1.msra.mxu0 0.0
  %442 = vmatprep.subr.mxu0 0.0
  %443 = vmatpush1.msra.mxu0 0.0
  %444 = vmatprep.subr.mxu0 0.0
  %445 = vmatpush1.msra.mxu0 0.0
  %446 = vmatprep.subr.mxu0 0.0
  %447 = vmatpush1.msra.mxu0 0.0
  %448 = vmatprep.subr.mxu0 0.0
  %449 = vmatpush1.msra.mxu0 0.0
  %450 = vmatprep.subr.mxu0 0.0
  %451 = vmatpush1.msra.mxu0 0.0
  %452 = vmatprep.subr.mxu0 0.0
  %453 = vmatpush1.msra.mxu0 0.0
  %454 = vmatprep.subr.mxu0 0.0
  %455 = vmatpush1.msra.mxu0 0.0
  %456 = vmatprep.subr.mxu0 0.0
  %457 = vmatpush1.msra.mxu0 0.0
  %458 = vmatprep.subr.mxu0 0.0
  %459 = vmatpush1.msra.mxu0 0.0
  %460 = vmatprep.subr.mxu0 0.0
  %461 = vmatpush1.msra.mxu0 0.0
  %462 = vmatprep.subr.mxu0 0.0
  %463 = vmatpush1.msra.mxu0 0.0
  %464 = vmatprep.subr.mxu0 0.0
  %465 = vmatpush1.msra.mxu0 0.0
  %466 = vmatprep.subr.mxu0 0.0
  %467 = vmatpush1.msra.mxu0 0.0
  %468 = vmatprep.subr.mxu0 0.0
  %469 = vmatpush1.msra.mxu0 0.0
  %470 = vmatprep.subr.mxu0 0.0
  %471 = vmatpush1.msra.mxu0 0.0
  %472 = vmatprep.subr.mxu0 0.0
  %473 = vmatpush1.msra.mxu0 0.0
  %474 = vmatprep.subr.mxu0 0.0
  %475 = vmatpush1.msra.mxu0 0.0
  %476 = vmatprep.subr.mxu0 0.0
  %477 = vmatpush1.msra.mxu0 0.0
  %478 = vmatprep.subr.mxu0 0.0
  %479 = vmatpush1.msra.mxu0 0.0
  %480 = vmatprep.subr.mxu0 0.0
  %481 = vmatpush1.msra.mxu0 0.0
  %482 = vmatprep.subr.mxu0 0.0
  %483 = vmatpush1.msra.mxu0 0.0
  %484 = vmatprep.subr.mxu0 0.0
  %485 = vmatpush1.msra.mxu0 0.0
  %486 = vmatprep.subr.mxu0 0.0
  %487 = vmatpush1.msra.mxu0 0.0
  %488 = vmatprep.subr.mxu0 0.0
  %489 = vmatpush1.msra.mxu0 0.0
  %490 = vmatprep.subr.mxu0 0.0
  %491 = vmatpush1.msra.mxu0 0.0
  %492 = vmatprep.subr.mxu0 0.0
  %493 = vmatpush1.msra.mxu0 0.0
  %494 = vmatprep.subr.mxu0 0.0
  %495 = vmatpush1.msra.mxu0 0.0
  %496 = vmatprep.mubr.f32.mxu0 0.0
  %497 = vmatmul.mubr.f32.gmra.mrb[0].mxu0 %v430
  %v498 = vpop.f32.mrb[0].mxu0
  %v499 = vadd.f32 %v426, %v498
  %v500 = vpop.f32.mrb[0].mxu0
  %501 = vdwg.mxu0
  %502 = vst [vmem:[%s5] sm:$0xff] %v499
  // Predicated region
  $region22: #{_classifier_forward_impl.1} parent=0 // pred_check
    _
  $region23: #{_classifier_forward_impl.1} parent=0 // pred_check_branch
    %504 = sbr.rel (0) target = $region25
  $region24: #{_classifier_forward_impl.1} parent=0 // pred_region
    _
  $region25: #{_classifier_forward_impl.1} parent=0 // pred_fallthru
    _
  // Predicated region
  $region26: #{_classifier_forward_impl.1} parent=0 // pred_check
    _
  $region27: #{_classifier_forward_impl.1} parent=0 // pred_check_branch
    %506 = sbr.rel (0) target = $region29
  $region28: #{_classifier_forward_impl.1} parent=0 // pred_region
    _
  $region29: #{_classifier_forward_impl.1} parent=0 // pred_fallthru
    _

</llo_original>
